<compile_context>
chip_gen: v5e
topology: v5e:2x2
jax: 0.10.0
libtpu: 0.0.40
codegen_flags: <defaults>
</compile_context>

<pallas_src>
import jax
import jax.numpy as jnp
from jax.experimental import pallas as pl
from jax.experimental.pallas import tpu as pltpu


# ----------------------------------------------------------------------------
# Kernel bodies
# ----------------------------------------------------------------------------
def _promote_dot(x, w):
    # Per-tile cast (inside the kernel) instead of materializing upcast copies
    # in HBM from the wrapper.  bf16 operands stay bf16 into the MXU with an
    # f32 accumulator via preferred_element_type.
    if x.dtype != w.dtype:
        dt = jnp.promote_types(x.dtype, w.dtype)
        x = x.astype(dt)
        w = w.astype(dt)
    return jnp.dot(x, w, preferred_element_type=jnp.float32)


def _tc_single_block_kernel(x_ref, w_ref, o_ref):
    # Whole problem in one shot: [M,K] @ [K,N] -> [M,N].
    o_ref[...] = _promote_dot(x_ref[...], w_ref[...])


def _tc_skinny_kernel(x_ref, w_ref, o_ref):
    # x (M,K) is VMEM-resident across all N panels; each panel written once.
    o_ref[...] = _promote_dot(x_ref[...], w_ref[...])


def _make_tiled_kernel(k_rem):
    """Tiled matmul body. `k_rem` (static) != 0 means the last K tile is
    partial and must be masked (OOB reads contain unspecified garbage)."""

    def kernel(x_ref, w_ref, o_ref):
        k = pl.program_id(2)
        x = x_ref[...]
        w = w_ref[...]
        if k_rem:  # static Python bool -> only emitted when a K tail exists
            not_last = k < pl.num_programs(2) - 1
            kx = jax.lax.broadcasted_iota(jnp.int32, x.shape, 1)
            kw = jax.lax.broadcasted_iota(jnp.int32, w.shape, 0)
            x = jnp.where(jnp.logical_or(not_last, kx < k_rem), x, 0)
            w = jnp.where(jnp.logical_or(not_last, kw < k_rem), w, 0)
        contrib = _promote_dot(x, w)

        @pl.when(k == 0)
        def _():
            o_ref[...] = contrib          # write-on-first-k: no zero-init pass

        @pl.when(k > 0)
        def _():
            o_ref[...] += contrib

    return kernel


def _block_spec(block_shape, index_map, buffer_count=None):
    """BlockSpec, optionally with a deeper pipeline (pl.Buffered)."""
    if buffer_count is not None:
        buffered = getattr(pl, "Buffered", None)
        if buffered is not None:
            try:
                return pl.BlockSpec(block_shape, index_map,
                                    pipeline_mode=buffered(buffer_count))
            except TypeError:
                pass  # older jax without pipeline_mode kwarg
    return pl.BlockSpec(block_shape, index_map)


# ----------------------------------------------------------------------------
# Wrapper
# ----------------------------------------------------------------------------
def tc_forward(step_scores, W, *, tm=512, tn=512, tk=1024):
    """COIN TC head forward: step_scores @ W -> float32 (same as torch.mm)."""
    M, K = step_scores.shape
    K2, N = W.shape
    assert K == K2, "in_features mismatch"

    x, w = step_scores, W            # no wrapper-side astype / pad / slice
    itemx = jnp.dtype(x.dtype).itemsize
    itemw = jnp.dtype(w.dtype).itemsize
    out_shape = jax.ShapeDtypeStruct((M, N), jnp.float32)

    # ---- Path 1: tiny problem -> single block, no grid. ---------------------
    if M * K + K * N + M * N <= 128 * 1024:
        return pl.pallas_call(_tc_single_block_kernel, out_shape=out_shape)(x, w)

    # ---- Path 2: skinny-M (GEMV-like): resident x, stream W as N panels. ----
    w_budget = 24 << 20              # 3 buffers of one W panel must fit here
    if M <= 64 and M * K * itemx <= (4 << 20) and 3 * K * 128 * itemw <= w_budget:
        tn_s = (w_budget // (3 * K * itemw) // 128) * 128
        tn_s = max(128, min(2048, tn_s))
        if N >= 256:
            # keep >= 2 N panels so both v7x TensorCores get work
            half = -(-N // 2)
            tn_s = min(tn_s, -(-half // 128) * 128)
        if tn_s >= N:
            tn_s = N
        vmem_limit = int(min(
            48 << 20,
            max(32 << 20,
                M * K * itemx + 3 * K * tn_s * itemw
                + 2 * M * tn_s * 4 + (2 << 20))))
        return pl.pallas_call(
            _tc_skinny_kernel,
            out_shape=out_shape,
            grid=(pl.cdiv(N, tn_s),),
            in_specs=[
                pl.BlockSpec((M, K), lambda j: (0, 0)),            # resident x
                _block_spec((K, tn_s), lambda j: (0, j), buffer_count=3),
            ],
            out_specs=pl.BlockSpec((M, tn_s), lambda j: (0, j)),
            compiler_params=pltpu.CompilerParams(
                dimension_semantics=("parallel",),
                vmem_limit_bytes=vmem_limit),
        )(x, w)

    # ---- Path 3: general tiled matmul (no padding; cdiv grid). --------------
    # Each tile dim is either a multiple of (8,128) or the full dim, so no
    # wrapper padding is needed.
    tm = tm if M > tm else M
    tn = tn if N > tn else N
    tk = tk if K > tk else K
    k_rem = K % tk if K > tk else 0

    vmem_limit = int(min(
        48 << 20,
        max(32 << 20,
            2 * (tm * tk * itemx + tk * tn * itemw)
            + 2 * tm * tn * 4 + (2 << 20))))

    return pl.pallas_call(
        _make_tiled_kernel(k_rem),
        out_shape=out_shape,
        grid=(pl.cdiv(M, tm), pl.cdiv(N, tn), pl.cdiv(K, tk)),
        in_specs=[
            pl.BlockSpec((tm, tk), lambda i, j, k: (i, k)),
            pl.BlockSpec((tk, tn), lambda i, j, k: (k, j)),
        ],
        out_specs=pl.BlockSpec((tm, tn), lambda i, j, k: (i, j)),
        compiler_params=pltpu.CompilerParams(
            dimension_semantics=("parallel", "parallel", "arbitrary"),
            vmem_limit_bytes=vmem_limit),
    )(x, w)


# ----------------------------------------------------------------------------
# Self-test
# ----------------------------------------------------------------------------
if __name__ == "__main__":
    keys = jax.random.split(jax.random.PRNGKey(0), 6)

    def _ref(a, b):
        return jnp.dot(a, b, precision=jax.lax.Precision.HIGHEST)

    def _check(out, ref, tol=2e-2):
        assert out.shape == ref.shape and out.dtype == jnp.float32
        err = jnp.linalg.norm(out - ref) / (jnp.linalg.norm(ref) + 1e-6)
        assert float(err) < tol, float(err)

    # Module's real regime: step_scores [8, 32] @ W [32, 16]  (tiny path).
    in_features, out_features, num_proposals = 32, 16, 8
    W = jax.random.normal(keys[0], (in_features, out_features), jnp.float32)
    step_scores = jax.random.normal(
        keys[1], (num_proposals, in_features), jnp.float32)
    out = jax.block_until_ready(tc_forward(step_scores, W))
    _check(out, _ref(step_scores, W))

    # Skinny-M / N-panel streaming path (M=8, K=256, N=896).
    xs = jax.random.normal(keys[2], (8, 256), jnp.float32)
    ws = jax.random.normal(keys[3], (256, 896), jnp.float32)
    _check(jax.block_until_ready(tc_forward(xs, ws)), _ref(xs, ws))

    # General tiled path with M/N/K remainders (600 x 1100 x 640).
    xb = jax.random.normal(keys[4], (600, 1100), jnp.float32)
    wb = jax.random.normal(keys[5], (1100, 640), jnp.float32)
    _check(jax.block_until_ready(tc_forward(xb, wb)), _ref(xb, wb))

    print("KERNEL_OK")
</pallas_src>

<mosaic_0001>
module attributes {stable_mosaic.version = 11 : i64} {
  func.func @_tc_single_block_kernel(%arg0: memref<8x32xf32, #tpu.memory_space<vmem>>, %arg1: memref<32x16xf32, #tpu.memory_space<vmem>>, %arg2: memref<8x16xf32, #tpu.memory_space<vmem>>) attributes {dimension_semantics = [], scalar_prefetch = 0 : i64, scratch_operands = 0 : i64, tpu.core_type = #tpu.core_type<tc>} {
    %c0 = arith.constant 0 : index
    %c0_0 = arith.constant 0 : index
    %0 = vector.load %arg0[%c0, %c0_0] : memref<8x32xf32, #tpu.memory_space<vmem>>, vector<8x32xf32>
    %c0_1 = arith.constant 0 : index
    %c0_2 = arith.constant 0 : index
    %1 = vector.load %arg1[%c0_1, %c0_2] : memref<32x16xf32, #tpu.memory_space<vmem>>, vector<32x16xf32>
    %cst = arith.constant dense<0.000000e+00> : vector<8x16xf32>
    %2 = tpu.matmul %0, %1, %cst {dimension_numbers = #tpu.dot_dimension_numbers<[1], [0], [0], [1], [0, 0, 1, 1], [], []>} : vector<8x32xf32>, vector<32x16xf32>, vector<8x16xf32> -> vector<8x16xf32>
    %c0_3 = arith.constant 0 : index
    %c0_4 = arith.constant 0 : index
    %3 = vector.load %arg2[%c0_3, %c0_4] : memref<8x16xf32, #tpu.memory_space<vmem>>, vector<8x16xf32>
    tpu.vector_store %arg2[%c0_3, %c0_4], %2 {strides = array<i32>} : memref<8x16xf32, #tpu.memory_space<vmem>>, vector<8x16xf32>,
    return
  }
}

</mosaic_0001>

<llo_original>
// kernel: tpu_custom_call.1
$region0: #{tpu_custom_call.1}
  #allocation0 [shape = 'u32[]', space=smem, size = 0x4, offset = 0x4, fixed_abs, tag = 'smem constant byte address 0x4 - core index']
  #allocation1 [shape = 'u32[72,128]{1,0:T(1,128)}', space=vmem, size = 0x9000, scoped, tag = 'internal scratch']
  %s0 = inlined_call_operand.vmem [shape: f32[8,32], index: 0, kind: input, shape index: {}]
  %s1 = inlined_call_operand.vmem [shape: f32[32,16], index: 1, kind: input, shape index: {}]
  %s2 = inlined_call_operand.hbm [shape: f32[8,16], index: 2, kind: output, shape index: {}]
  %s3 = sld [smem:[#allocation0]]
  $region18: #{tpu_custom_call.1} parent=0
    _
  %s5 = ssub.s32 1, %s3
  %s6 = scalar_select 0, %s5, %s3
  $region1: #{tpu_custom_call.1} parent=0
    #allocation2 [shape = 'u8[4096]{0}', space=vmem, size = 0x1000, scoped, tag = 'output window, operand 0, single buffered']
    #allocation3 [shape = 's32[1]{0}', space=sflag, size = 0x4, scoped, tag = 'scoped memory for tpu_custom_call.1']
    %7 = vsyncpa [#allocation3], 0
    // Predicated region
    $region2: #{tpu_custom_call.1} parent=1 // pred_check
      _
    $region3: #{tpu_custom_call.1} parent=1 // pred_check_branch
      %9 = sbr.rel (0) target = $region5
    $region4: #{tpu_custom_call.1} parent=1 // pred_region
      _
    $region5: #{tpu_custom_call.1} parent=1 // pred_fallthru
      _
    // Predicated region
    $region6: #{tpu_custom_call.1} parent=1 // pred_check
      _
    $region7: #{tpu_custom_call.1} parent=1 // pred_check_branch
      %11 = sbr.rel (0) target = $region9
    $region8: #{tpu_custom_call.1} parent=1 // pred_region
      _
    $region9: #{tpu_custom_call.1} parent=1 // pred_fallthru
      _
    %v12 = vld [vmem:[%s0] sm:$0xff]
    %v13 = vld [vmem:[%s1] sm:$0xff]
    %v14 = vld [vmem:[%s1 + $0x8] sm:$0xff]
    %v15 = vld [vmem:[%s1 + $0x10] sm:$0xff]
    %v16 = vld [vmem:[%s1 + $0x18] sm:$0xff]
    %vm17 = vcmask 261120
    %v19 = vsel %vm17, %v12, 0
    %21 = vmatpush.msra.mxu0 0.0
    %22 = vmatpush.msra.mxu0 0.0
    %23 = vmatpush.msra.mxu0 0.0
    %24 = vmatpush.msra.mxu0 0.0
    %25 = vmatpush.msra.mxu0 0.0
    %26 = vmatpush.msra.mxu0 0.0
    %27 = vmatpush.msra.mxu0 0.0
    %28 = vmatpush.msra.mxu0 0.0
    %29 = vmatpush.msra.mxu0 0.0
    %30 = vmatpush.msra.mxu0 0.0
    %31 = vmatpush.msra.mxu0 0.0
    %32 = vmatpush.msra.mxu0 0.0
    %33 = vmatpush.msra.mxu0 %v16
    %34 = vmatpush.msra.mxu0 %v15
    %35 = vmatpush.msra.mxu0 %v14
    %36 = vmatpush.msra.mxu0 %v13
    %37 = vmatmul.f32.gmra.mxu0 %v19
    %v38 = vpop.f32.mrf.mxu0
    %v39 = vadd.f32 0.0, %v38
    %40 = vdwg.mxu0
    %vm41 = vcmask 130048
    %42 = vst.msk [vmem:[#allocation2] sm:$0xff] %vm41, %v39
    // Predicated region
    $region10: #{tpu_custom_call.1} parent=1 // pred_check
      _
    $region11: #{tpu_custom_call.1} parent=1 // pred_check_branch
      %44 = sbr.rel (0) target = $region13
    $region12: #{tpu_custom_call.1} parent=1 // pred_region
      %46 = vsyncadd [#allocation3], 0
      %s48 = sshll.u32 [#allocation2], 4
      %s49 = int_to_ptr.vmem [resolvable:$true] %s48
      %s50 = sshll.u32 %s2, 4
      %s51 = int_to_ptr.hbm [resolvable:$true] %s50
      %53 = dma.vmem_to_hbm [thread:$0]  %s49, 128, %s51, [#allocation3]
    $region13: #{tpu_custom_call.1} parent=1 // pred_fallthru
      _
    // Predicated region
    $region14: #{tpu_custom_call.1} parent=1 // pred_check
      _
    $region15: #{tpu_custom_call.1} parent=1 // pred_check_branch
      %55 = sbr.rel (0) target = $region17
    $region16: #{tpu_custom_call.1} parent=1 // pred_region
      %57 = dma.done [#allocation3], 128
    $region17: #{tpu_custom_call.1} parent=1 // pred_fallthru
      _
    %58 = vsyncpa [#allocation3], 1

</llo_original>
